<compile_context>
chip_gen: v5e
topology: v5e:2x2
jax: 0.10.0
libtpu: 0.0.40
codegen_flags: <defaults>
</compile_context>

<pallas_src>
import functools

import jax
import jax.numpy as jnp
from jax import lax
from jax.experimental import pallas as pl
from jax.experimental.pallas import tpu as pltpu


def _round_up(x, m):
    return ((x + m - 1) // m) * m


def _pad_to(a, shape):
    """Zero-pad a 2-D array up to `shape` (layout plumbing only, preserves math)."""
    return jnp.pad(a, ((0, shape[0] - a.shape[0]), (0, shape[1] - a.shape[1])))


def _choose_tiling(B, tb):
    """Balanced, lane-aligned batch tiles; >=2 (even) grid steps when B is big enough."""
    n = max(1, -(-B // tb))          # steps at the requested cap
    if B > 128:                      # big enough to split across 2 TensorCores (v7x)
        n = max(n, 2)
        n += n % 2                   # even step count -> balanced megacore sharding
    tb_eff = _round_up(-(-B // n), 128)   # near-equal tiles, multiple of 128 lanes
    return tb_eff, n, n * tb_eff


def _make_actor_kernel(input_size, out_size):
    vpu_layer1 = input_size <= 8     # tiny contraction -> VPU FMAs, skip the MXU
    vpu_layer3 = out_size <= 8       # tiny output -> VPU mul + XLU sublane reduce

    def actor_kernel(x_ref, w1t_ref, b1_ref, w2t_ref, b2_ref, w3_ref, b3_ref, o_ref):
        x = x_ref[...]                                       # (input_size, TB) f32

        # ---- layer 1: Linear + ReLU (feature-major: h1 = W1^T x + b1) ----
        if vpu_layer1:
            h1 = b1_ref[...] + w1t_ref[:, 0:1] * x[0:1, :]   # (H,1)*(1,TB) -> (H,TB)
            for k in range(1, input_size):
                h1 = h1 + w1t_ref[:, k:k + 1] * x[k:k + 1, :]
        else:
            h1 = jnp.dot(w1t_ref[...], x, preferred_element_type=jnp.float32) + b1_ref[...]
        h1 = jnp.maximum(h1, 0.0)                            # (H, TB)

        # ---- layer 2: Linear + ReLU (MXU, f32 accumulate) -----------------
        h2 = jnp.dot(w2t_ref[...], h1, preferred_element_type=jnp.float32) + b2_ref[...]
        h2 = jnp.maximum(h2, 0.0)                            # (H, TB)

        # ---- layer 3: narrow Linear + tanh (tanh only on real outputs) ----
        if vpu_layer3:
            rows = []
            for r in range(out_size):
                contrib = w3_ref[:, r:r + 1] * h2            # (H,1)*(H,TB) -> (H,TB)
                rows.append(jnp.sum(contrib, axis=0, keepdims=True) + b3_ref[r:r + 1, :])
            h3 = rows[0] if out_size == 1 else jnp.concatenate(rows, axis=0)
        else:
            # general out_size: transposed-LHS MXU matmul (not exercised in the demo)
            h3 = lax.dot_general(w3_ref[...], h2, (((0,), (0,)), ((), ())),
                                 preferred_element_type=jnp.float32) + b3_ref[...]
        o_ref[...] = jnp.tanh(h3)                            # (out_size, TB)

    return actor_kernel


@functools.partial(jax.jit, static_argnames=("tb",))
def actor_forward(state, params, *, tb=8192):
    """state: (B, input_size) f32. params: dict of w1,b1,w2,b2,w3,b3 (x @ W + b layout)."""
    B, input_size = state.shape
    hidden = params["w1"].shape[1]
    out_size = params["w3"].shape[1]

    # Feature-major weights: hidden padded to a multiple of 8 sublanes only.
    # Zero padding is exact: padded hidden units compute relu(0)=0 and contribute nothing.
    h_pad = _round_up(hidden, 8)
    w1t = _pad_to(params["w1"].T, (h_pad, input_size))       # (H, in)
    b1c = _pad_to(params["b1"].T, (h_pad, 1))                # (H, 1)
    w2t = _pad_to(params["w2"].T, (h_pad, h_pad))            # (H, H)
    b2c = _pad_to(params["b2"].T, (h_pad, 1))                # (H, 1)
    w3p = _pad_to(params["w3"], (h_pad, out_size))           # (H, out) -- natural layout
    b3c = params["b3"].T                                     # (out, 1)

    # Balanced batch tiling on the lane axis; weights stay resident in VMEM.
    tb_eff, n_steps, b_padded = _choose_tiling(B, tb)
    xT = state.T                                             # (in, B)  batch-on-lanes
    if b_padded != B:
        xT = jnp.pad(xT, ((0, 0), (0, b_padded - B)))

    kernel = _make_actor_kernel(input_size, out_size)
    out = pl.pallas_call(
        kernel,
        out_shape=jax.ShapeDtypeStruct((out_size, b_padded), jnp.float32),
        grid=(n_steps,),
        in_specs=[
            pl.BlockSpec((input_size, tb_eff), lambda i: (0, i)),   # state tile (streamed)
            pl.BlockSpec((h_pad, input_size), lambda i: (0, 0)),    # W1^T (resident)
            pl.BlockSpec((h_pad, 1), lambda i: (0, 0)),             # b1
            pl.BlockSpec((h_pad, h_pad), lambda i: (0, 0)),         # W2^T
            pl.BlockSpec((h_pad, 1), lambda i: (0, 0)),             # b2
            pl.BlockSpec((h_pad, out_size), lambda i: (0, 0)),      # W3
            pl.BlockSpec((out_size, 1), lambda i: (0, 0)),          # b3
        ],
        out_specs=pl.BlockSpec((out_size, tb_eff), lambda i: (0, i)),  # narrow, lane-dense
        compiler_params=pltpu.CompilerParams(dimension_semantics=("parallel",)),
    )(xT, w1t, b1c, w2t, b2c, w3p, b3c)

    return out[:, :B].T                                      # (B, out_size)


def init_actor_params(key, input_size, hidden_size, output_size):
    """Deterministic init mimicking PyTorch nn.Linear default U(-1/sqrt(fan_in), 1/sqrt(fan_in))."""
    def linear_init(k, fan_in, fan_out):
        kw, kb = jax.random.split(k)
        bound = 1.0 / jnp.sqrt(fan_in)
        w = jax.random.uniform(kw, (fan_in, fan_out), jnp.float32, -bound, bound)
        b = jax.random.uniform(kb, (1, fan_out), jnp.float32, -bound, bound)
        return w, b

    k1, k2, k3 = jax.random.split(key, 3)
    w1, b1 = linear_init(k1, input_size, hidden_size)
    w2, b2 = linear_init(k2, hidden_size, hidden_size)
    w3, b3 = linear_init(k3, hidden_size, output_size)
    return {"w1": w1, "b1": b1, "w2": w2, "b2": b2, "w3": w3, "b3": b3}


def actor_reference(state, p):
    """Pure-JAX reference for correctness check."""
    h1 = jax.nn.relu(state @ p["w1"] + p["b1"])
    h2 = jax.nn.relu(h1 @ p["w2"] + p["b2"])
    return jnp.tanh(h2 @ p["w3"] + p["b3"])


if __name__ == "__main__":
    # MountainCarContinuous: observation dim 2, action dim 1.
    input_size, hidden_size, output_size = 2, 32, 1

    key = jax.random.PRNGKey(0)
    kp, kx1, kx2 = jax.random.split(key, 3)
    params = init_actor_params(kp, input_size, hidden_size, output_size)

    # Small demo batch (single grid step, tile = 128 lanes).
    state_small = jax.random.normal(kx1, (8, input_size), dtype=jnp.float32)
    out_small = jax.block_until_ready(actor_forward(state_small, params))
    ref_small = actor_reference(state_small, params)
    assert out_small.shape == (8, output_size)
    assert jnp.allclose(out_small, ref_small, atol=1e-5, rtol=1e-5)

    # Larger, awkward batch: exercises batch padding + balanced 2-step parallel grid.
    state_big = jax.random.normal(kx2, (1037, input_size), dtype=jnp.float32)
    out_big = jax.block_until_ready(actor_forward(state_big, params))
    ref_big = actor_reference(state_big, params)
    assert out_big.shape == (1037, output_size)
    assert jnp.allclose(out_big, ref_big, atol=1e-5, rtol=1e-5)

    print("KERNEL_OK")
</pallas_src>

<mosaic_0001>
module attributes {stable_mosaic.version = 11 : i64} {
  func.func @actor_kernel(%arg0: i32, %arg1: memref<2x128xf32, #tpu.memory_space<vmem>>, %arg2: memref<32x2xf32, #tpu.memory_space<vmem>>, %arg3: memref<32x1xf32, #tpu.memory_space<vmem>>, %arg4: memref<32x32xf32, #tpu.memory_space<vmem>>, %arg5: memref<32x1xf32, #tpu.memory_space<vmem>>, %arg6: memref<32x1xf32, #tpu.memory_space<vmem>>, %arg7: memref<1x1xf32, #tpu.memory_space<vmem>>, %arg8: memref<1x128xf32, #tpu.memory_space<vmem>>) attributes {dimension_semantics = [#tpu.dimension_semantics<parallel>], iteration_bounds = array<i64: 1>, scalar_prefetch = 0 : i64, scratch_operands = 0 : i64, tpu.core_type = #tpu.core_type<tc>, window_params = [{transform_indices = @transform_0, window_bounds = array<i64: 2, 128>}, {pipeline_mode = #tpu.pipeline_mode<synchronous>, transform_indices = @transform_1, window_bounds = array<i64: 32, 2>}, {pipeline_mode = #tpu.pipeline_mode<synchronous>, transform_indices = @transform_2, window_bounds = array<i64: 32, 1>}, {pipeline_mode = #tpu.pipeline_mode<synchronous>, transform_indices = @transform_3, window_bounds = array<i64: 32, 32>}, {pipeline_mode = #tpu.pipeline_mode<synchronous>, transform_indices = @transform_4, window_bounds = array<i64: 32, 1>}, {pipeline_mode = #tpu.pipeline_mode<synchronous>, transform_indices = @transform_5, window_bounds = array<i64: 32, 1>}, {pipeline_mode = #tpu.pipeline_mode<synchronous>, transform_indices = @transform_6, window_bounds = array<i64: 1, 1>}, {transform_indices = @transform_7, window_bounds = array<i64: 1, 128>}]} {
    %c0 = arith.constant 0 : index
    %c0_0 = arith.constant 0 : index
    %0 = vector.load %arg1[%c0, %c0_0] : memref<2x128xf32, #tpu.memory_space<vmem>>, vector<2x128xf32>
    %c0_1 = arith.constant 0 : index
    %c0_2 = arith.constant 0 : index
    %1 = vector.load %arg3[%c0_1, %c0_2] : memref<32x1xf32, #tpu.memory_space<vmem>>, vector<32x1xf32>
    %c0_3 = arith.constant 0 : index
    %c0_4 = arith.constant 0 : index
    %2 = vector.load %arg2[%c0_3, %c0_4] : memref<32x2xf32, #tpu.memory_space<vmem>>, vector<32x1xf32>
    %3 = vector.extract_strided_slice %0 {offsets = [0, 0], sizes = [1, 128], strides = [1, 1]} : vector<2x128xf32> to vector<1x128xf32>
    %4 = vector.broadcast %2 : vector<32x1xf32> to vector<32x128xf32>
    %5 = vector.broadcast %3 : vector<1x128xf32> to vector<32x128xf32>
    %6 = arith.mulf %4, %5 : vector<32x128xf32>
    %7 = vector.broadcast %1 : vector<32x1xf32> to vector<32x128xf32>
    %8 = arith.addf %7, %6 : vector<32x128xf32>
    %c0_5 = arith.constant 0 : index
    %c1 = arith.constant 1 : index
    %9 = vector.load %arg2[%c0_5, %c1] : memref<32x2xf32, #tpu.memory_space<vmem>>, vector<32x1xf32>
    %10 = vector.extract_strided_slice %0 {offsets = [1, 0], sizes = [1, 128], strides = [1, 1]} : vector<2x128xf32> to vector<1x128xf32>
    %11 = vector.broadcast %9 : vector<32x1xf32> to vector<32x128xf32>
    %12 = vector.broadcast %10 : vector<1x128xf32> to vector<32x128xf32>
    %13 = arith.mulf %11, %12 : vector<32x128xf32>
    %14 = arith.addf %8, %13 : vector<32x128xf32>
    %cst = arith.constant 0.000000e+00 : f32
    %15 = vector.broadcast %cst : f32 to vector<32x128xf32>
    %16 = arith.maximumf %14, %15 : vector<32x128xf32>
    %c0_6 = arith.constant 0 : index
    %c0_7 = arith.constant 0 : index
    %17 = vector.load %arg4[%c0_6, %c0_7] : memref<32x32xf32, #tpu.memory_space<vmem>>, vector<32x32xf32>
    %cst_8 = arith.constant dense<0.000000e+00> : vector<32x128xf32>
    %18 = tpu.matmul %17, %16, %cst_8 {dimension_numbers = #tpu.dot_dimension_numbers<[1], [0], [0], [1], [0, 0, 1, 1], [], []>} : vector<32x32xf32>, vector<32x128xf32>, vector<32x128xf32> -> vector<32x128xf32>
    %c0_9 = arith.constant 0 : index
    %c0_10 = arith.constant 0 : index
    %19 = vector.load %arg5[%c0_9, %c0_10] : memref<32x1xf32, #tpu.memory_space<vmem>>, vector<32x1xf32>
    %20 = vector.broadcast %19 : vector<32x1xf32> to vector<32x128xf32>
    %21 = arith.addf %18, %20 : vector<32x128xf32>
    %cst_11 = arith.constant 0.000000e+00 : f32
    %22 = vector.broadcast %cst_11 : f32 to vector<32x128xf32>
    %23 = arith.maximumf %21, %22 : vector<32x128xf32>
    %c0_12 = arith.constant 0 : index
    %c0_13 = arith.constant 0 : index
    %24 = vector.load %arg6[%c0_12, %c0_13] : memref<32x1xf32, #tpu.memory_space<vmem>>, vector<32x1xf32>
    %25 = vector.broadcast %24 : vector<32x1xf32> to vector<32x128xf32>
    %26 = arith.mulf %25, %23 : vector<32x128xf32>
    %cst_14 = arith.constant dense<0.000000e+00> : vector<128xf32>
    %27 = vector.multi_reduction <add>, %26, %cst_14 [0] : vector<32x128xf32> to vector<128xf32>
    %28 = vector.shape_cast %27 : vector<128xf32> to vector<1x128xf32>
    %c0_15 = arith.constant 0 : index
    %c0_16 = arith.constant 0 : index
    %29 = vector.load %arg7[%c0_15, %c0_16] : memref<1x1xf32, #tpu.memory_space<vmem>>, vector<1x1xf32>
    %30 = vector.broadcast %29 : vector<1x1xf32> to vector<1x128xf32>
    %31 = arith.addf %28, %30 : vector<1x128xf32>
    %32 = math.tanh %31 : vector<1x128xf32>
    %c0_17 = arith.constant 0 : index
    %c0_18 = arith.constant 0 : index
    %33 = vector.load %arg8[%c0_17, %c0_18] : memref<1x128xf32, #tpu.memory_space<vmem>>, vector<1x128xf32>
    tpu.vector_store %arg8[%c0_17, %c0_18], %32 {strides = array<i32>} : memref<1x128xf32, #tpu.memory_space<vmem>>, vector<1x128xf32>,
    return
  }
  func.func @transform_0(%arg0: i32) -> (i32, i32) {
    %c0_i32 = arith.constant 0 : i32
    %c0_i32_0 = arith.constant 0 : i32
    return %c0_i32, %arg0 : i32, i32
  }
  func.func @transform_1(%arg0: i32) -> (i32, i32) {
    %c0_i32 = arith.constant 0 : i32
    %c0_i32_0 = arith.constant 0 : i32
    %c0_i32_1 = arith.constant 0 : i32
    return %c0_i32, %c0_i32_0 : i32, i32
  }
  func.func @transform_2(%arg0: i32) -> (i32, i32) {
    %c0_i32 = arith.constant 0 : i32
    %c0_i32_0 = arith.constant 0 : i32
    %c0_i32_1 = arith.constant 0 : i32
    return %c0_i32, %c0_i32_0 : i32, i32
  }
  func.func @transform_3(%arg0: i32) -> (i32, i32) {
    %c0_i32 = arith.constant 0 : i32
    %c0_i32_0 = arith.constant 0 : i32
    %c0_i32_1 = arith.constant 0 : i32
    return %c0_i32, %c0_i32_0 : i32, i32
  }
  func.func @transform_4(%arg0: i32) -> (i32, i32) {
    %c0_i32 = arith.constant 0 : i32
    %c0_i32_0 = arith.constant 0 : i32
    %c0_i32_1 = arith.constant 0 : i32
    return %c0_i32, %c0_i32_0 : i32, i32
  }
  func.func @transform_5(%arg0: i32) -> (i32, i32) {
    %c0_i32 = arith.constant 0 : i32
    %c0_i32_0 = arith.constant 0 : i32
    %c0_i32_1 = arith.constant 0 : i32
    return %c0_i32, %c0_i32_0 : i32, i32
  }
  func.func @transform_6(%arg0: i32) -> (i32, i32) {
    %c0_i32 = arith.constant 0 : i32
    %c0_i32_0 = arith.constant 0 : i32
    %c0_i32_1 = arith.constant 0 : i32
    return %c0_i32, %c0_i32_0 : i32, i32
  }
  func.func @transform_7(%arg0: i32) -> (i32, i32) {
    %c0_i32 = arith.constant 0 : i32
    %c0_i32_0 = arith.constant 0 : i32
    return %c0_i32, %arg0 : i32, i32
  }
}

</mosaic_0001>

<llo_original>
// kernel: actor_forward.1
$region0: #{actor_forward.1}
  #allocation0 [shape = 'u32[]', space=smem, size = 0x4, offset = 0x4, fixed_abs, tag = 'smem constant byte address 0x4 - core index']
  #allocation1 [shape = 'u32[72,128]{1,0:T(1,128)}', space=vmem, size = 0x9000, scoped, tag = 'internal scratch']
  #allocation2 [shape = 'f32[1,1]{1,0:T(1,128)S(1)}', space=vmem, size = 0x200, scoped, tag = 'scoped memory for actor_forward.1']
  %s0 = inlined_call_operand.vmem [shape: f32[2,128], index: 0, kind: input, shape index: {}]
  %s1 = inlined_call_operand.vmem [shape: f32[32,2], index: 1, kind: input, shape index: {}]
  %s2 = inlined_call_operand.vmem [shape: f32[32,1], index: 2, kind: input, shape index: {}]
  %s3 = inlined_call_operand.vmem [shape: f32[32,32], index: 3, kind: input, shape index: {}]
  %s4 = inlined_call_operand.vmem [shape: f32[32,1], index: 4, kind: input, shape index: {}]
  %s5 = inlined_call_operand.vmem [shape: f32[32,1], index: 5, kind: input, shape index: {}]
  %s6 = inlined_call_operand.<no memory space> [shape: f32[1,1], index: 6, kind: input, shape index: {}]
  %s7 = inlined_call_operand.vmem [shape: f32[1,128], index: 7, kind: output, shape index: {}]
  %s8 = sld [smem:[#allocation0]]
  $region38: #{actor_forward.1} parent=0
    _
  %s10 = ssub.s32 1, %s8
  %s11 = scalar_select 0, %s10, %s8
  %v12 = vstv %s6
  %13 = vst [vmem:[#allocation2] sm:$0x1] %v12
  // Predicated region
  $region2: #{actor_forward.1} parent=0 // pred_check
    _
  $region3: #{actor_forward.1} parent=0 // pred_check_branch
    %15 = sbr.rel (0) target = $region5
  $region4: #{actor_forward.1} parent=0 // pred_region
    _
  $region5: #{actor_forward.1} parent=0 // pred_fallthru
    _
  // Predicated region
  $region6: #{actor_forward.1} parent=0 // pred_check
    _
  $region7: #{actor_forward.1} parent=0 // pred_check_branch
    %17 = sbr.rel (0) target = $region9
  $region8: #{actor_forward.1} parent=0 // pred_region
    _
  $region9: #{actor_forward.1} parent=0 // pred_fallthru
    _
  // Predicated region
  $region10: #{actor_forward.1} parent=0 // pred_check
    _
  $region11: #{actor_forward.1} parent=0 // pred_check_branch
    %19 = sbr.rel (0) target = $region13
  $region12: #{actor_forward.1} parent=0 // pred_region
    _
  $region13: #{actor_forward.1} parent=0 // pred_fallthru
    _
  // Predicated region
  $region14: #{actor_forward.1} parent=0 // pred_check
    _
  $region15: #{actor_forward.1} parent=0 // pred_check_branch
    %21 = sbr.rel (0) target = $region17
  $region16: #{actor_forward.1} parent=0 // pred_region
    _
  $region17: #{actor_forward.1} parent=0 // pred_fallthru
    _
  // Predicated region
  $region18: #{actor_forward.1} parent=0 // pred_check
    _
  $region19: #{actor_forward.1} parent=0 // pred_check_branch
    %23 = sbr.rel (0) target = $region21
  $region20: #{actor_forward.1} parent=0 // pred_region
    _
  $region21: #{actor_forward.1} parent=0 // pred_fallthru
    _
  // Predicated region
  $region22: #{actor_forward.1} parent=0 // pred_check
    _
  $region23: #{actor_forward.1} parent=0 // pred_check_branch
    %25 = sbr.rel (0) target = $region25
  $region24: #{actor_forward.1} parent=0 // pred_region
    _
  $region25: #{actor_forward.1} parent=0 // pred_fallthru
    _
  // Predicated region
  $region26: #{actor_forward.1} parent=0 // pred_check
    _
  $region27: #{actor_forward.1} parent=0 // pred_check_branch
    %27 = sbr.rel (0) target = $region29
  $region28: #{actor_forward.1} parent=0 // pred_region
    _
  $region29: #{actor_forward.1} parent=0 // pred_fallthru
    _
  %v28 = vld [vmem:[%s0] sm:$0x3]
  %v29 = vld [vmem:[%s2] sm:$0xff]
  %v30 = vld [vmem:[%s2 + $0x8] sm:$0xff]
  %v31 = vld [vmem:[%s2 + $0x10] sm:$0xff]
  %v32 = vld [vmem:[%s2 + $0x18] sm:$0xff]
  %v33 = vld [vmem:[%s1] sm:$0xff]
  %v34 = vld [vmem:[%s1 + $0x8] sm:$0xff]
  %v35 = vld [vmem:[%s1 + $0x10] sm:$0xff]
  %v36 = vld [vmem:[%s1 + $0x18] sm:$0xff]
  %38 = vset.pattern.permute.xlu0 0
  %39 = vperm.xlu0 %38, %v33
  %v40 = vpop.permute.xlu0 %39
  %43 = vset.pattern.permute.xlu0 0
  %44 = vperm.xlu0 %43, %v34
  %v45 = vpop.permute.xlu0 %44
  %48 = vset.pattern.permute.xlu0 0
  %49 = vperm.xlu0 %48, %v35
  %v50 = vpop.permute.xlu0 %49
  %53 = vset.pattern.permute.xlu0 0
  %54 = vperm.xlu0 %53, %v36
  %v55 = vpop.permute.xlu0 %54
  %v57 = vperm.slane %v28, 0
  %v58 = vmul.f32 %v40, %v57
  %v59 = vmul.f32 %v45, %v57
  %v60 = vmul.f32 %v50, %v57
  %v61 = vmul.f32 %v55, %v57
  %63 = vset.pattern.permute.xlu0 0
  %64 = vperm.xlu0 %63, %v29
  %v65 = vpop.permute.xlu0 %64
  %68 = vset.pattern.permute.xlu0 0
  %69 = vperm.xlu0 %68, %v30
  %v70 = vpop.permute.xlu0 %69
  %73 = vset.pattern.permute.xlu0 0
  %74 = vperm.xlu0 %73, %v31
  %v75 = vpop.permute.xlu0 %74
  %78 = vset.pattern.permute.xlu0 0
  %79 = vperm.xlu0 %78, %v32
  %v80 = vpop.permute.xlu0 %79
  %v82 = vadd.f32 %v65, %v58
  %v83 = vadd.f32 %v70, %v59
  %v84 = vadd.f32 %v75, %v60
  %v85 = vadd.f32 %v80, %v61
  %86 = vset.pattern.permute.xlu0 1
  %87 = vperm.xlu0 %86, %v33
  %v88 = vpop.permute.xlu0 %87
  %90 = vset.pattern.permute.xlu0 1
  %91 = vperm.xlu0 %90, %v34
  %v92 = vpop.permute.xlu0 %91
  %94 = vset.pattern.permute.xlu0 1
  %95 = vperm.xlu0 %94, %v35
  %v96 = vpop.permute.xlu0 %95
  %98 = vset.pattern.permute.xlu0 1
  %99 = vperm.xlu0 %98, %v36
  %v100 = vpop.permute.xlu0 %99
  %v102 = vperm.slane %v28, 1
  %v103 = vmul.f32 %v88, %v102
  %v104 = vmul.f32 %v92, %v102
  %v105 = vmul.f32 %v96, %v102
  %v106 = vmul.f32 %v100, %v102
  %v107 = vadd.f32 %v82, %v103
  %v108 = vadd.f32 %v83, %v104
  %v109 = vadd.f32 %v84, %v105
  %v110 = vadd.f32 %v85, %v106
  %v111 = vmax.f32 %v107, 0.0
  %v112 = vmax.f32 %v108, 0.0
  %v113 = vmax.f32 %v109, 0.0
  %v114 = vmax.f32 %v110, 0.0
  %v115 = vld [vmem:[%s3] sm:$0xff]
  %v116 = vld [vmem:[%s3 + $0x8] sm:$0xff]
  %v117 = vld [vmem:[%s3 + $0x10] sm:$0xff]
  %v118 = vld [vmem:[%s3 + $0x18] sm:$0xff]
  %v119 = vld [vmem:[%s4] sm:$0xff]
  %v120 = vld [vmem:[%s4 + $0x8] sm:$0xff]
  %v121 = vld [vmem:[%s4 + $0x10] sm:$0xff]
  %v122 = vld [vmem:[%s4 + $0x18] sm:$0xff]
  %124 = vset.pattern.permute.xlu0 0
  %125 = vperm.xlu0 %124, %v119
  %v126 = vpop.permute.xlu0 %125
  %129 = vset.pattern.permute.xlu0 0
  %130 = vperm.xlu0 %129, %v120
  %v131 = vpop.permute.xlu0 %130
  %134 = vset.pattern.permute.xlu0 0
  %135 = vperm.xlu0 %134, %v121
  %v136 = vpop.permute.xlu0 %135
  %139 = vset.pattern.permute.xlu0 0
  %140 = vperm.xlu0 %139, %v122
  %v141 = vpop.permute.xlu0 %140
  %vm143 = vcmask 261120
  %v145 = vsel %vm143, %v115, 0
  %v148 = vsel %vm143, %v116, 0
  %v151 = vsel %vm143, %v117, 0
  %v154 = vsel %vm143, %v118, 0
  %156 = vmatpush.msra.mxu0 0.0
  %157 = vmatpush.msra.mxu0 0.0
  %158 = vmatpush.msra.mxu0 0.0
  %159 = vmatpush.msra.mxu0 0.0
  %160 = vmatpush.msra.mxu0 0.0
  %161 = vmatpush.msra.mxu0 0.0
  %162 = vmatpush.msra.mxu0 0.0
  %163 = vmatpush.msra.mxu0 0.0
  %164 = vmatpush.msra.mxu0 0.0
  %165 = vmatpush.msra.mxu0 0.0
  %166 = vmatpush.msra.mxu0 0.0
  %167 = vmatpush.msra.mxu0 0.0
  %168 = vmatpush.msra.mxu0 %v114
  %169 = vmatpush.msra.mxu0 %v113
  %170 = vmatpush.msra.mxu0 %v112
  %171 = vmatpush.msra.mxu0 %v111
  %172 = vmatmul.f32.gmra.mxu0 %v145
  %v173 = vpop.f32.mrf.mxu0
  %v174 = vadd.f32 %v126, %v173
  %175 = vmatmul.f32.gmra.mxu0 %v148
  %v176 = vpop.f32.mrf.mxu0
  %v177 = vadd.f32 %v131, %v176
  %178 = vmatmul.f32.gmra.mxu0 %v151
  %v179 = vpop.f32.mrf.mxu0
  %v180 = vadd.f32 %v136, %v179
  %181 = vmatmul.f32.gmra.mxu0 %v154
  %v182 = vpop.f32.mrf.mxu0
  %v183 = vadd.f32 %v141, %v182
  %184 = vdwg.mxu0
  %v185 = vmax.f32 %v174, 0.0
  %v186 = vmax.f32 %v177, 0.0
  %v187 = vmax.f32 %v180, 0.0
  %v188 = vmax.f32 %v183, 0.0
  %v189 = vld [vmem:[%s5] sm:$0xff]
  %v190 = vld [vmem:[%s5 + $0x8] sm:$0xff]
  %v191 = vld [vmem:[%s5 + $0x10] sm:$0xff]
  %v192 = vld [vmem:[%s5 + $0x18] sm:$0xff]
  %194 = vset.pattern.permute.xlu0 0
  %195 = vperm.xlu0 %194, %v189
  %v196 = vpop.permute.xlu0 %195
  %199 = vset.pattern.permute.xlu0 0
  %200 = vperm.xlu0 %199, %v190
  %v201 = vpop.permute.xlu0 %200
  %204 = vset.pattern.permute.xlu0 0
  %205 = vperm.xlu0 %204, %v191
  %v206 = vpop.permute.xlu0 %205
  %209 = vset.pattern.permute.xlu0 0
  %210 = vperm.xlu0 %209, %v192
  %v211 = vpop.permute.xlu0 %210
  %v213 = vmul.f32 %v196, %v185
  %v214 = vmul.f32 %v201, %v186
  %v215 = vmul.f32 %v206, %v187
  %v216 = vmul.f32 %v211, %v188
  %v217 = vadd.f32 %v213, %v214
  %v218 = vadd.f32 %v217, %v215
  %v219 = vadd.f32 %v218, %v216
  %v220 = vrot.slane %v219, 4
  %v221 = vadd.f32 %v219, %v220
  %v222 = vrot.slane %v221, 2
  %v223 = vadd.f32 %v221, %v222
  %v224 = vrot.slane %v223, 1
  %v225 = vadd.f32 %v223, %v224
  %v226 = vld [vmem:[#allocation2] sm:$0x1]
  %228 = vset.pattern.permute.xlu0 0
  %229 = vperm.xlu0 %228, %v226
  %v230 = vpop.permute.xlu0 %229
  %v232 = vperm.slane %v230, 0
  %v233 = vadd.f32 %v225, %v232
  %v234 = vtanh.pop %v233
  %235 = vst [vmem:[%s7] sm:$0x1] %v234
  // Predicated region
  $region30: #{actor_forward.1} parent=0 // pred_check
    _
  $region31: #{actor_forward.1} parent=0 // pred_check_branch
    %237 = sbr.rel (0) target = $region33
  $region32: #{actor_forward.1} parent=0 // pred_region
    _
  $region33: #{actor_forward.1} parent=0 // pred_fallthru
    _
  // Predicated region
  $region34: #{actor_forward.1} parent=0 // pred_check
    _
  $region35: #{actor_forward.1} parent=0 // pred_check_branch
    %239 = sbr.rel (0) target = $region37
  $region36: #{actor_forward.1} parent=0 // pred_region
    _
  $region37: #{actor_forward.1} parent=0 // pred_fallthru
    _

</llo_original>
